<compile_context>
chip_gen: v6e
topology: v6e:2x2x1
jax: 0.10.0
libtpu: 0.0.40
codegen_flags: <defaults>
</compile_context>

<pallas_src>
import functools

import numpy as np
import jax
import jax.numpy as jnp
from jax.experimental import pallas as pl
from jax.experimental.pallas import tpu as pltpu


def _make_freq_bands(k, use_logspace=True, max_freq=None):
    # Deterministic "buffer" init, mirroring the PyTorch __init__.
    if use_logspace:
        freqs = (2.0 ** np.arange(0, k, dtype=np.float64)) * np.pi
    else:
        assert max_freq is not None
        freqs = (2.0 ** np.linspace(0.0, float(max_freq), num=k + 1)[:-1]) * np.pi
    return np.asarray(freqs, dtype=np.float32)


def _round_up(a, b):
    return ((a + b - 1) // b) * b


def _fourier_kernel(freqs_ref, x_ref, o_ref, *, d_in, k, include_input):
    # freqs_ref: (k, 1)       frequency column (lane-broadcast inside kernel)
    # x_ref:     (D, TN)      feature-major input block (lane-dense)
    # o_ref:     (d_out, TN)  feature-major output block (lane-dense)
    x = x_ref[...]                       # (D, TN) float32, loaded once
    fcol = freqs_ref[...]                # (k, 1)
    dk = d_in * k
    for d in range(d_in):                # D is small & static -> unrolled
        # (1, TN) row * (k, 1) column -> (k, TN): full 128-lane vectors,
        # k sublanes per op (VPU mul + EUP cos/sin), one slab store each.
        e = x[d:d + 1, :] * fcol
        o_ref[d * k:(d + 1) * k, :] = jnp.cos(e)
        o_ref[dk + d * k:dk + (d + 1) * k, :] = jnp.sin(e)
    if include_input:
        o_ref[2 * dk:2 * dk + d_in, :] = x


def fourier_feat_enc(x, k, include_input=True, use_logspace=True,
                     max_freq=None, tile_cols=8192):
    """Pallas TPU implementation of FourierFeatEnc.forward.

    x: float array of shape (..., D).
    Returns float32 array of shape (..., 2*D*k + D) if include_input
    else (..., 2*D*k).
    """
    freqs_col = jnp.asarray(
        _make_freq_bands(k, use_logspace, max_freq).reshape(k, 1))
    x = jnp.asarray(x, jnp.float32)
    orig_shape = x.shape
    d_in = orig_shape[-1]
    d_out = 2 * d_in * k + (d_in if include_input else 0)

    n_rows = int(np.prod(orig_shape[:-1])) if len(orig_shape) > 1 else 1

    # Feature-major slab: rows = coordinate dims, lanes = flattened batch.
    x_t = x.reshape(n_rows, d_in).T                     # (D, N)

    # Lane tile: big multiple of 128, clamped so tiny inputs aren't over-padded.
    tn = max(128, (int(tile_cols) // 128) * 128)
    tn = min(tn, _round_up(n_rows, 128))
    n_padded = _round_up(n_rows, tn)
    if n_padded != n_rows:
        x_t = jnp.pad(x_t, ((0, 0), (0, n_padded - n_rows)))

    kernel = functools.partial(
        _fourier_kernel, d_in=d_in, k=k, include_input=include_input)

    out_t = pl.pallas_call(
        kernel,
        out_shape=jax.ShapeDtypeStruct((d_out, n_padded), jnp.float32),
        grid=(n_padded // tn,),
        in_specs=[pl.BlockSpec((k, 1), lambda i: (0, 0)),       # freq column
                  pl.BlockSpec((d_in, tn), lambda i: (0, i))],  # x block
        out_specs=pl.BlockSpec((d_out, tn), lambda i: (0, i)),
        compiler_params=pltpu.CompilerParams(
            dimension_semantics=("parallel",)),
    )(freqs_col, x_t)

    out2d = out_t[:, :n_rows].T                         # (N, d_out), torch order
    return out2d.reshape(*orig_shape[:-1], d_out)


def _reference(x, k, include_input=True, use_logspace=True, max_freq=None):
    freqs = jnp.asarray(_make_freq_bands(k, use_logspace, max_freq))
    embed = (x[..., None] * freqs).reshape(*x.shape[:-1], -1)
    if include_input:
        return jnp.concatenate((jnp.cos(embed), jnp.sin(embed), x), axis=-1)
    return jnp.concatenate((jnp.cos(embed), jnp.sin(embed)), axis=-1)


if __name__ == "__main__":
    key = jax.random.PRNGKey(0)
    # Typical NeuTex usage: coordinates with D=3, k frequency bands.
    k = 6
    x = jax.random.uniform(key, (2, 4, 16, 3), dtype=jnp.float32,
                           minval=-1.0, maxval=1.0)

    out = fourier_feat_enc(x, k=k, include_input=True)
    out = jax.block_until_ready(out)
    ref = jax.block_until_ready(_reference(x, k=k, include_input=True))
    assert out.shape == ref.shape, (out.shape, ref.shape)
    np.testing.assert_allclose(np.asarray(out), np.asarray(ref),
                               rtol=1e-5, atol=1e-5)

    # Also exercise the include_input=False branch.
    out2 = jax.block_until_ready(fourier_feat_enc(x, k=k, include_input=False))
    ref2 = jax.block_until_ready(_reference(x, k=k, include_input=False))
    assert out2.shape == ref2.shape, (out2.shape, ref2.shape)
    np.testing.assert_allclose(np.asarray(out2), np.asarray(ref2),
                               rtol=1e-5, atol=1e-5)

    print("KERNEL_OK")
</pallas_src>

<mosaic_0001>
module attributes {stable_mosaic.version = 11 : i64} {
  func.func @_fourier_kernel(%arg0: i32, %arg1: memref<6x1xf32, #tpu.memory_space<vmem>>, %arg2: memref<3x128xf32, #tpu.memory_space<vmem>>, %arg3: memref<39x128xf32, #tpu.memory_space<vmem>>) attributes {dimension_semantics = [#tpu.dimension_semantics<parallel>], iteration_bounds = array<i64: 1>, scalar_prefetch = 0 : i64, scratch_operands = 0 : i64, tpu.core_type = #tpu.core_type<tc>, window_params = [{pipeline_mode = #tpu.pipeline_mode<synchronous>, transform_indices = @transform_0, window_bounds = array<i64: 6, 1>}, {transform_indices = @transform_1, window_bounds = array<i64: 3, 128>}, {transform_indices = @transform_2, window_bounds = array<i64: 39, 128>}]} {
    %c0 = arith.constant 0 : index
    %c0_0 = arith.constant 0 : index
    %0 = vector.load %arg2[%c0, %c0_0] : memref<3x128xf32, #tpu.memory_space<vmem>>, vector<3x128xf32>
    %c0_1 = arith.constant 0 : index
    %c0_2 = arith.constant 0 : index
    %1 = vector.load %arg1[%c0_1, %c0_2] : memref<6x1xf32, #tpu.memory_space<vmem>>, vector<6x1xf32>
    %2 = vector.extract_strided_slice %0 {offsets = [0, 0], sizes = [1, 128], strides = [1, 1]} : vector<3x128xf32> to vector<1x128xf32>
    %3 = vector.broadcast %2 : vector<1x128xf32> to vector<6x128xf32>
    %4 = vector.broadcast %1 : vector<6x1xf32> to vector<6x128xf32>
    %5 = arith.mulf %3, %4 : vector<6x128xf32>
    %6 = math.cos %5 : vector<6x128xf32>
    %c0_3 = arith.constant 0 : index
    %c0_4 = arith.constant 0 : index
    %7 = vector.load %arg3[%c0_3, %c0_4] : memref<39x128xf32, #tpu.memory_space<vmem>>, vector<6x128xf32>
    tpu.vector_store %arg3[%c0_3, %c0_4], %6 {strides = array<i32>} : memref<39x128xf32, #tpu.memory_space<vmem>>, vector<6x128xf32>,
    %8 = math.sin %5 : vector<6x128xf32>
    %c18 = arith.constant 18 : index
    %c0_5 = arith.constant 0 : index
    %9 = vector.load %arg3[%c18, %c0_5] : memref<39x128xf32, #tpu.memory_space<vmem>>, vector<6x128xf32>
    tpu.vector_store %arg3[%c18, %c0_5], %8 {strides = array<i32>} : memref<39x128xf32, #tpu.memory_space<vmem>>, vector<6x128xf32>,
    %10 = vector.extract_strided_slice %0 {offsets = [1, 0], sizes = [1, 128], strides = [1, 1]} : vector<3x128xf32> to vector<1x128xf32>
    %11 = vector.broadcast %10 : vector<1x128xf32> to vector<6x128xf32>
    %12 = vector.broadcast %1 : vector<6x1xf32> to vector<6x128xf32>
    %13 = arith.mulf %11, %12 : vector<6x128xf32>
    %14 = math.cos %13 : vector<6x128xf32>
    %c6 = arith.constant 6 : index
    %c0_6 = arith.constant 0 : index
    %15 = vector.load %arg3[%c6, %c0_6] : memref<39x128xf32, #tpu.memory_space<vmem>>, vector<6x128xf32>
    tpu.vector_store %arg3[%c6, %c0_6], %14 {strides = array<i32>} : memref<39x128xf32, #tpu.memory_space<vmem>>, vector<6x128xf32>,
    %16 = math.sin %13 : vector<6x128xf32>
    %c24 = arith.constant 24 : index
    %c0_7 = arith.constant 0 : index
    %17 = vector.load %arg3[%c24, %c0_7] : memref<39x128xf32, #tpu.memory_space<vmem>>, vector<6x128xf32>
    tpu.vector_store %arg3[%c24, %c0_7], %16 {strides = array<i32>} : memref<39x128xf32, #tpu.memory_space<vmem>>, vector<6x128xf32>,
    %18 = vector.extract_strided_slice %0 {offsets = [2, 0], sizes = [1, 128], strides = [1, 1]} : vector<3x128xf32> to vector<1x128xf32>
    %19 = vector.broadcast %18 : vector<1x128xf32> to vector<6x128xf32>
    %20 = vector.broadcast %1 : vector<6x1xf32> to vector<6x128xf32>
    %21 = arith.mulf %19, %20 : vector<6x128xf32>
    %22 = math.cos %21 : vector<6x128xf32>
    %c12 = arith.constant 12 : index
    %c0_8 = arith.constant 0 : index
    %23 = vector.load %arg3[%c12, %c0_8] : memref<39x128xf32, #tpu.memory_space<vmem>>, vector<6x128xf32>
    tpu.vector_store %arg3[%c12, %c0_8], %22 {strides = array<i32>} : memref<39x128xf32, #tpu.memory_space<vmem>>, vector<6x128xf32>,
    %24 = math.sin %21 : vector<6x128xf32>
    %c30 = arith.constant 30 : index
    %c0_9 = arith.constant 0 : index
    %25 = vector.load %arg3[%c30, %c0_9] : memref<39x128xf32, #tpu.memory_space<vmem>>, vector<6x128xf32>
    tpu.vector_store %arg3[%c30, %c0_9], %24 {strides = array<i32>} : memref<39x128xf32, #tpu.memory_space<vmem>>, vector<6x128xf32>,
    %c36 = arith.constant 36 : index
    %c0_10 = arith.constant 0 : index
    %26 = vector.load %arg3[%c36, %c0_10] : memref<39x128xf32, #tpu.memory_space<vmem>>, vector<3x128xf32>
    tpu.vector_store %arg3[%c36, %c0_10], %0 {strides = array<i32>} : memref<39x128xf32, #tpu.memory_space<vmem>>, vector<3x128xf32>,
    return
  }
  func.func @transform_0(%arg0: i32) -> (i32, i32) {
    %c0_i32 = arith.constant 0 : i32
    %c0_i32_0 = arith.constant 0 : i32
    %c0_i32_1 = arith.constant 0 : i32
    return %c0_i32, %c0_i32_0 : i32, i32
  }
  func.func @transform_1(%arg0: i32) -> (i32, i32) {
    %c0_i32 = arith.constant 0 : i32
    %c0_i32_0 = arith.constant 0 : i32
    return %c0_i32, %arg0 : i32, i32
  }
  func.func @transform_2(%arg0: i32) -> (i32, i32) {
    %c0_i32 = arith.constant 0 : i32
    %c0_i32_0 = arith.constant 0 : i32
    return %c0_i32, %arg0 : i32, i32
  }
}

</mosaic_0001>

<llo_original>
// kernel: tpu_custom_call.1
$region0: #{tpu_custom_call.1}
  #allocation0 [shape = 'u32[]', space=smem, size = 0x4, offset = 0x4, fixed_abs, tag = 'smem constant byte address 0x4 - core index']
  #allocation1 [shape = 'u32[144,128]{1,0:T(1,128)}', space=vmem, size = 0x12000, scoped, tag = 'internal scratch']
  %s0 = inlined_call_operand.vmem [shape: f32[6,1], index: 0, kind: input, shape index: {}]
  %s1 = inlined_call_operand.vmem [shape: f32[3,128], index: 1, kind: input, shape index: {}]
  %s2 = inlined_call_operand.hbm [shape: f32[39,128], index: 2, kind: output, shape index: {}]
  %s3 = sld [smem:[#allocation0]]
  $region18: #{tpu_custom_call.1} parent=0
    _
  %s5 = ssub.s32 1, %s3
  %s6 = scalar_select 0, %s5, %s3
  $region1: #{tpu_custom_call.1} parent=0
    #allocation2 [shape = 'u8[20480]{0}', space=vmem, size = 0x5000, scoped, tag = 'output window, operand 0, single buffered']
    #allocation3 [shape = 's32[1]{0}', space=sflag, size = 0x4, scoped, tag = 'scoped memory for tpu_custom_call.1']
    %7 = vsyncpa [#allocation3], 0
    // Predicated region
    $region2: #{tpu_custom_call.1} parent=1 // pred_check
      _
    $region3: #{tpu_custom_call.1} parent=1 // pred_check_branch
      %9 = sbr.rel (0) target = $region5
    $region4: #{tpu_custom_call.1} parent=1 // pred_region
      _
    $region5: #{tpu_custom_call.1} parent=1 // pred_fallthru
      _
    // Predicated region
    $region6: #{tpu_custom_call.1} parent=1 // pred_check
      _
    $region7: #{tpu_custom_call.1} parent=1 // pred_check_branch
      %11 = sbr.rel (0) target = $region9
    $region8: #{tpu_custom_call.1} parent=1 // pred_region
      _
    $region9: #{tpu_custom_call.1} parent=1 // pred_fallthru
      _
    %v12 = vld [vmem:[%s1] sm:$0x7]
    %v13 = vld [vmem:[%s0] sm:$0x3f]
    %v14 = vlaneseq
    %v15 = vshrl.u32 %v14, 7
    %v16 = vsub.s32 0, %v15
    %v17 = vrot.slane %v12, %v16
    %19 = vset.pattern.permute.xlu0 0
    %20 = vperm.xlu0 %19, %v13
    %v21 = vpop.permute.xlu0 %20
    %v23 = vmul.f32 %v17, %v21
    %v24 = vand.u32 2147483647, %v23
    %vm25 = vcmp.le.f32.partialorder %v24, 0.7853982
    %vm26 = vcmp.lt.s32.totalorder %v23, 0
    %v27 = vand.u32 %v23, 2139095040
    %v28 = vshrl.u32 %v27, 23
    %v29 = vsub.s32 %v28, 127
    %v30 = vand.u32 2147483647, %v23
    %v31 = vand.u32 %v30, 8388607
    %v32 = vor.u32 %v31, 8388608
    %v33 = vsub.s32 0, %v32
    %v34 = vadd.s32 %v29, 1
    %vm35 = vcmp.gt.s32.totalorder %v34, 0
    %v36 = vsel %vm35, %v34, 0
    %v37 = vshrl.u32 %v36, 5
    %v38 = vand.u32 %v36, 31
    %v39 = vsub.s32 32, %v38
    %v40 = vshrl.u32 683565275, %v39
    %v41 = vshll.u32 683565275, %v38
    %v42 = vshrl.u32 2475754826, %v39
    %v43 = vor.u32 %v41, %v42
    %v44 = vshll.u32 2475754826, %v38
    %v45 = vshrl.u32 2131351028, %v39
    %v46 = vor.u32 %v44, %v45
    %v47 = vshll.u32 2131351028, %v38
    %v48 = vshrl.u32 2102212464, %v39
    %v49 = vor.u32 %v47, %v48
    %v50 = vshll.u32 2102212464, %v38
    %v51 = vshrl.u32 920167782, %v39
    %v52 = vor.u32 %v50, %v51
    %v53 = vshll.u32 920167782, %v38
    %v54 = vshrl.u32 1326507024, %v39
    %v55 = vor.u32 %v53, %v54
    %vm56 = vcmp.lt.s32.totalorder %v37, 1
    %vm57 = vcmp.lt.s32.totalorder %v37, 2
    %vm58 = vcmp.lt.s32.totalorder %v37, 3
    %vm59 = vcmp.lt.s32.totalorder %v37, 4
    %v60 = vsel %vm56, %v40, %v43
    %v61 = vsel %vm59, %v49, 2102212464
    %v62 = vsel %vm58, %v46, %v61
    %v63 = vsel %vm57, %v60, %v62
    %v64 = vsel %vm56, %v43, %v46
    %v65 = vsel %vm59, %v52, 920167782
    %v66 = vsel %vm58, %v49, %v65
    %v67 = vsel %vm57, %v64, %v66
    %v68 = vsel %vm56, %v46, %v49
    %v69 = vsel %vm59, %v55, 1326507024
    %v70 = vsel %vm58, %v52, %v69
    %v71 = vsel %vm57, %v68, %v70
    %v72 = vshll.u32 %v32, 8
    %v73 = vmul.u32.u64.compose %v72, %v71
    %v74 = vextract.low.u32 %v73
    %v75 = vextract.high.u32 %v73
    %v76 = vmul.u32.u64.compose %v72, %v67
    %v77 = vextract.low.u32 %v76
    %v78 = vextract.high.u32 %v76
    %v79 = vmul.u32 %v72, %v63
    %v80 = vadd.s32 %v75, %v77
    %vm81 = vc.u32 %v75, %v77
    %v82 = vadd.s32 %v78, 1
    %v83 = vsel %vm81, %v82, %v78
    %v84 = vadd.s32 %v79, %v83
    %v85 = vadd.s32 %v84, 536870912
    %v86 = vshrl.u32 %v85, 30
    %v87 = vshll.u32 %v86, 30
    %v88 = vsub.s32 %v84, %v87
    %vm89 = vcmp.lt.s32.totalorder %v88, 0
    %v90 = vsub.s32 0, %v88
    %v91 = vsel %vm89, %v90, %v88
    %v92 = vclz %v91
    %v93 = vsub.s32 %v92, 2
    %vm94 = vcmp.gt.s32.totalorder 0, %v93
    %v95 = vsel %vm94, 0, %v93
    %v96 = vsub.s32 32, %v95
    %v97 = vshll.u32 %v88, %v95
    %v98 = vshrl.u32 %v80, %v96
    %v99 = vor.u32 %v97, %v98
    %v100 = vsub.s32 4294967266, %v95
    %v101 = vadd.s32 %v100, 127
    %v102 = vshll.u32 %v101, 23
    %v103 = vor.u32 4788187, %v102
    %v104 = vand.u32 2147483647, %v103
    %v106 = vcvt.s32.f32 %v99
    %v107 = vmul.f32 %v106, %v104
    %v108 = vxor.u32 %v107, 2147483648
    %v109 = vsel %vm26, %v108, %v107
    %v110 = vsub.s32 4, %v86
    %v111 = vsel %vm26, %v110, %v86
    %v112 = vsel %vm25, %v23, %v109
    %v113 = vsel %vm25, 0, %v111
    %v114 = vcosq.f32.pop %v112
    %v115 = vsinq.f32.pop %v112
    %vm116 = vweird.f32 %v23
    %v117 = vand.u32 %v113, 3
    %vm118 = vcmp.lt.s32.totalorder %v117, 2
    %vm119 = vcmp.eq.s32.totalorder %v117, 0
    %v120 = vxor.u32 %v115, 2147483648
    %v121 = vsel %vm119, %v114, %v120
    %vm122 = vcmp.eq.s32.totalorder %v117, 2
    %v123 = vxor.u32 %v114, 2147483648
    %v124 = vsel %vm122, %v123, %v115
    %v125 = vsel %vm118, %v121, %v124
    %v126 = vsel %vm116, nan, %v125
    %127 = vst [vmem:[#allocation2] sm:$0x3f] %v126
    %v128 = vand.u32 2147483647, %v23
    %vm129 = vcmp.le.f32.partialorder %v128, 0.7853982
    %vm130 = vcmp.lt.s32.totalorder %v23, 0
    %v131 = vand.u32 %v23, 2139095040
    %v132 = vshrl.u32 %v131, 23
    %v133 = vsub.s32 %v132, 127
    %v134 = vand.u32 2147483647, %v23
    %v135 = vand.u32 %v134, 8388607
    %v136 = vor.u32 %v135, 8388608
    %v137 = vsub.s32 0, %v136
    %v138 = vadd.s32 %v133, 1
    %vm139 = vcmp.gt.s32.totalorder %v138, 0
    %v140 = vsel %vm139, %v138, 0
    %v141 = vshrl.u32 %v140, 5
    %v142 = vand.u32 %v140, 31
    %v143 = vsub.s32 32, %v142
    %v144 = vshrl.u32 683565275, %v143
    %v145 = vshll.u32 683565275, %v142
    %v146 = vshrl.u32 2475754826, %v143
    %v147 = vor.u32 %v145, %v146
    %v148 = vshll.u32 2475754826, %v142
    %v149 = vshrl.u32 2131351028, %v143
    %v150 = vor.u32 %v148, %v149
    %v151 = vshll.u32 2131351028, %v142
    %v152 = vshrl.u32 2102212464, %v143
    %v153 = vor.u32 %v151, %v152
    %v154 = vshll.u32 2102212464, %v142
    %v155 = vshrl.u32 920167782, %v143
    %v156 = vor.u32 %v154, %v155
    %v157 = vshll.u32 920167782, %v142
    %v158 = vshrl.u32 1326507024, %v143
    %v159 = vor.u32 %v157, %v158
    %vm160 = vcmp.lt.s32.totalorder %v141, 1
    %vm161 = vcmp.lt.s32.totalorder %v141, 2
    %vm162 = vcmp.lt.s32.totalorder %v141, 3
    %vm163 = vcmp.lt.s32.totalorder %v141, 4
    %v164 = vsel %vm160, %v144, %v147
    %v165 = vsel %vm163, %v153, 2102212464
    %v166 = vsel %vm162, %v150, %v165
    %v167 = vsel %vm161, %v164, %v166
    %v168 = vsel %vm160, %v147, %v150
    %v169 = vsel %vm163, %v156, 920167782
    %v170 = vsel %vm162, %v153, %v169
    %v171 = vsel %vm161, %v168, %v170
    %v172 = vsel %vm160, %v150, %v153
    %v173 = vsel %vm163, %v159, 1326507024
    %v174 = vsel %vm162, %v156, %v173
    %v175 = vsel %vm161, %v172, %v174
    %v176 = vshll.u32 %v136, 8
    %v177 = vmul.u32.u64.compose %v176, %v175
    %v178 = vextract.low.u32 %v177
    %v179 = vextract.high.u32 %v177
    %v180 = vmul.u32.u64.compose %v176, %v171
    %v181 = vextract.low.u32 %v180
    %v182 = vextract.high.u32 %v180
    %v183 = vmul.u32 %v176, %v167
    %v184 = vadd.s32 %v179, %v181
    %vm185 = vc.u32 %v179, %v181
    %v186 = vadd.s32 %v182, 1
    %v187 = vsel %vm185, %v186, %v182
    %v188 = vadd.s32 %v183, %v187
    %v189 = vadd.s32 %v188, 536870912
    %v190 = vshrl.u32 %v189, 30
    %v191 = vshll.u32 %v190, 30
    %v192 = vsub.s32 %v188, %v191
    %vm193 = vcmp.lt.s32.totalorder %v192, 0
    %v194 = vsub.s32 0, %v192
    %v195 = vsel %vm193, %v194, %v192
    %v196 = vclz %v195
    %v197 = vsub.s32 %v196, 2
    %vm198 = vcmp.gt.s32.totalorder 0, %v197
    %v199 = vsel %vm198, 0, %v197
    %v200 = vsub.s32 32, %v199
    %v201 = vshll.u32 %v192, %v199
    %v202 = vshrl.u32 %v184, %v200
    %v203 = vor.u32 %v201, %v202
    %v204 = vsub.s32 4294967266, %v199
    %v205 = vadd.s32 %v204, 127
    %v206 = vshll.u32 %v205, 23
    %v207 = vor.u32 4788187, %v206
    %v208 = vand.u32 2147483647, %v207
    %v210 = vcvt.s32.f32 %v203
    %v211 = vmul.f32 %v210, %v208
    %v212 = vxor.u32 %v211, 2147483648
    %v213 = vsel %vm130, %v212, %v211
    %v214 = vsub.s32 4, %v190
    %v215 = vsel %vm130, %v214, %v190
    %v216 = vsel %vm129, %v23, %v213
    %v217 = vsel %vm129, 0, %v215
    %v218 = vcosq.f32.pop %v216
    %v219 = vsinq.f32.pop %v216
    %vm220 = vweird.f32 %v23
    %v221 = vadd.s32 %v217, 3
    %v222 = vand.u32 %v221, 3
    %vm223 = vcmp.lt.s32.totalorder %v222, 2
    %vm224 = vcmp.eq.s32.totalorder %v222, 0
    %v225 = vxor.u32 %v219, 2147483648
    %v226 = vsel %vm224, %v218, %v225
    %vm227 = vcmp.eq.s32.totalorder %v222, 2
    %v228 = vxor.u32 %v218, 2147483648
    %v229 = vsel %vm227, %v228, %v219
    %v230 = vsel %vm223, %v226, %v229
    %v231 = vsel %vm220, nan, %v230
    %232 = vst [vmem:[#allocation2 + $0x12] sm:$0x3f] %v231
    %v233 = vlaneseq
    %v234 = vshrl.u32 %v233, 7
    %v235 = vsub.s32 1, %v234
    %v236 = vrot.slane %v12, %v235
    %v237 = vmul.f32 %v236, %v21
    %v238 = vand.u32 2147483647, %v237
    %vm239 = vcmp.le.f32.partialorder %v238, 0.7853982
    %vm240 = vcmp.lt.s32.totalorder %v237, 0
    %v241 = vand.u32 %v237, 2139095040
    %v242 = vshrl.u32 %v241, 23
    %v243 = vsub.s32 %v242, 127
    %v244 = vand.u32 2147483647, %v237
    %v245 = vand.u32 %v244, 8388607
    %v246 = vor.u32 %v245, 8388608
    %v247 = vsub.s32 0, %v246
    %v248 = vadd.s32 %v243, 1
    %vm249 = vcmp.gt.s32.totalorder %v248, 0
    %v250 = vsel %vm249, %v248, 0
    %v251 = vshrl.u32 %v250, 5
    %v252 = vand.u32 %v250, 31
    %v253 = vsub.s32 32, %v252
    %v254 = vshrl.u32 683565275, %v253
    %v255 = vshll.u32 683565275, %v252
    %v256 = vshrl.u32 2475754826, %v253
    %v257 = vor.u32 %v255, %v256
    %v258 = vshll.u32 2475754826, %v252
    %v259 = vshrl.u32 2131351028, %v253
    %v260 = vor.u32 %v258, %v259
    %v261 = vshll.u32 2131351028, %v252
    %v262 = vshrl.u32 2102212464, %v253
    %v263 = vor.u32 %v261, %v262
    %v264 = vshll.u32 2102212464, %v252
    %v265 = vshrl.u32 920167782, %v253
    %v266 = vor.u32 %v264, %v265
    %v267 = vshll.u32 920167782, %v252
    %v268 = vshrl.u32 1326507024, %v253
    %v269 = vor.u32 %v267, %v268
    %vm270 = vcmp.lt.s32.totalorder %v251, 1
    %vm271 = vcmp.lt.s32.totalorder %v251, 2
    %vm272 = vcmp.lt.s32.totalorder %v251, 3
    %vm273 = vcmp.lt.s32.totalorder %v251, 4
    %v274 = vsel %vm270, %v254, %v257
    %v275 = vsel %vm273, %v263, 2102212464
    %v276 = vsel %vm272, %v260, %v275
    %v277 = vsel %vm271, %v274, %v276
    %v278 = vsel %vm270, %v257, %v260
    %v279 = vsel %vm273, %v266, 920167782
    %v280 = vsel %vm272, %v263, %v279
    %v281 = vsel %vm271, %v278, %v280
    %v282 = vsel %vm270, %v260, %v263
    %v283 = vsel %vm273, %v269, 1326507024
    %v284 = vsel %vm272, %v266, %v283
    %v285 = vsel %vm271, %v282, %v284
    %v286 = vshll.u32 %v246, 8
    %v287 = vmul.u32.u64.compose %v286, %v285
    %v288 = vextract.low.u32 %v287
    %v289 = vextract.high.u32 %v287
    %v290 = vmul.u32.u64.compose %v286, %v281
    %v291 = vextract.low.u32 %v290
    %v292 = vextract.high.u32 %v290
    %v293 = vmul.u32 %v286, %v277
    %v294 = vadd.s32 %v289, %v291
    %vm295 = vc.u32 %v289, %v291
    %v296 = vadd.s32 %v292, 1
    %v297 = vsel %vm295, %v296, %v292
    %v298 = vadd.s32 %v293, %v297
    %v299 = vadd.s32 %v298, 536870912
    %v300 = vshrl.u32 %v299, 30
    %v301 = vshll.u32 %v300, 30
    %v302 = vsub.s32 %v298, %v301
    %vm303 = vcmp.lt.s32.totalorder %v302, 0
    %v304 = vsub.s32 0, %v302
    %v305 = vsel %vm303, %v304, %v302
    %v306 = vclz %v305
    %v307 = vsub.s32 %v306, 2
    %vm308 = vcmp.gt.s32.totalorder 0, %v307
    %v309 = vsel %vm308, 0, %v307
    %v310 = vsub.s32 32, %v309
    %v311 = vshll.u32 %v302, %v309
    %v312 = vshrl.u32 %v294, %v310
    %v313 = vor.u32 %v311, %v312
    %v314 = vsub.s32 4294967266, %v309
    %v315 = vadd.s32 %v314, 127
    %v316 = vshll.u32 %v315, 23
    %v317 = vor.u32 4788187, %v316
    %v318 = vand.u32 2147483647, %v317
    %v320 = vcvt.s32.f32 %v313
    %v321 = vmul.f32 %v320, %v318
    %v322 = vxor.u32 %v321, 2147483648
    %v323 = vsel %vm240, %v322, %v321
    %v324 = vsub.s32 4, %v300
    %v325 = vsel %vm240, %v324, %v300
    %v326 = vsel %vm239, %v237, %v323
    %v327 = vsel %vm239, 0, %v325
    %v328 = vcosq.f32.pop %v326
    %v329 = vsinq.f32.pop %v326
    %vm330 = vweird.f32 %v237
    %v331 = vand.u32 %v327, 3
    %vm332 = vcmp.lt.s32.totalorder %v331, 2
    %vm333 = vcmp.eq.s32.totalorder %v331, 0
    %v334 = vxor.u32 %v329, 2147483648
    %v335 = vsel %vm333, %v328, %v334
    %vm336 = vcmp.eq.s32.totalorder %v331, 2
    %v337 = vxor.u32 %v328, 2147483648
    %v338 = vsel %vm336, %v337, %v329
    %v339 = vsel %vm332, %v335, %v338
    %v340 = vsel %vm330, nan, %v339
    %341 = vst [vmem:[#allocation2 + $0x6] sm:$0x3f] %v340
    %v342 = vand.u32 2147483647, %v237
    %vm343 = vcmp.le.f32.partialorder %v342, 0.7853982
    %vm344 = vcmp.lt.s32.totalorder %v237, 0
    %v345 = vand.u32 %v237, 2139095040
    %v346 = vshrl.u32 %v345, 23
    %v347 = vsub.s32 %v346, 127
    %v348 = vand.u32 2147483647, %v237
    %v349 = vand.u32 %v348, 8388607
    %v350 = vor.u32 %v349, 8388608
    %v351 = vsub.s32 0, %v350
    %v352 = vadd.s32 %v347, 1
    %vm353 = vcmp.gt.s32.totalorder %v352, 0
    %v354 = vsel %vm353, %v352, 0
    %v355 = vshrl.u32 %v354, 5
    %v356 = vand.u32 %v354, 31
    %v357 = vsub.s32 32, %v356
    %v358 = vshrl.u32 683565275, %v357
    %v359 = vshll.u32 683565275, %v356
    %v360 = vshrl.u32 2475754826, %v357
    %v361 = vor.u32 %v359, %v360
    %v362 = vshll.u32 2475754826, %v356
    %v363 = vshrl.u32 2131351028, %v357
    %v364 = vor.u32 %v362, %v363
    %v365 = vshll.u32 2131351028, %v356
    %v366 = vshrl.u32 2102212464, %v357
    %v367 = vor.u32 %v365, %v366
    %v368 = vshll.u32 2102212464, %v356
    %v369 = vshrl.u32 920167782, %v357
    %v370 = vor.u32 %v368, %v369
    %v371 = vshll.u32 920167782, %v356
    %v372 = vshrl.u32 1326507024, %v357
    %v373 = vor.u32 %v371, %v372
    %vm374 = vcmp.lt.s32.totalorder %v355, 1
    %vm375 = vcmp.lt.s32.totalorder %v355, 2
    %vm376 = vcmp.lt.s32.totalorder %v355, 3
    %vm377 = vcmp.lt.s32.totalorder %v355, 4
    %v378 = vsel %vm374, %v358, %v361
    %v379 = vsel %vm377, %v367, 2102212464
    %v380 = vsel %vm376, %v364, %v379
    %v381 = vsel %vm375, %v378, %v380
    %v382 = vsel %vm374, %v361, %v364
    %v383 = vsel %vm377, %v370, 920167782
    %v384 = vsel %vm376, %v367, %v383
    %v385 = vsel %vm375, %v382, %v384
    %v386 = vsel %vm374, %v364, %v367
    %v387 = vsel %vm377, %v373, 1326507024
    %v388 = vsel %vm376, %v370, %v387
    %v389 = vsel %vm375, %v386, %v388
    %v390 = vshll.u32 %v350, 8
    %v391 = vmul.u32.u64.compose %v390, %v389
    %v392 = vextract.low.u32 %v391
    %v393 = vextract.high.u32 %v391
    %v394 = vmul.u32.u64.compose %v390, %v385
    %v395 = vextract.low.u32 %v394
    %v396 = vextract.high.u32 %v394
    %v397 = vmul.u32 %v390, %v381
    %v398 = vadd.s32 %v393, %v395
    %vm399 = vc.u32 %v393, %v395
    %v400 = vadd.s32 %v396, 1
    %v401 = vsel %vm399, %v400, %v396
    %v402 = vadd.s32 %v397, %v401
    %v403 = vadd.s32 %v402, 536870912
    %v404 = vshrl.u32 %v403, 30
    %v405 = vshll.u32 %v404, 30
    %v406 = vsub.s32 %v402, %v405
    %vm407 = vcmp.lt.s32.totalorder %v406, 0
    %v408 = vsub.s32 0, %v406
    %v409 = vsel %vm407, %v408, %v406
    %v410 = vclz %v409
    %v411 = vsub.s32 %v410, 2
    %vm412 = vcmp.gt.s32.totalorder 0, %v411
    %v413 = vsel %vm412, 0, %v411
    %v414 = vsub.s32 32, %v413
    %v415 = vshll.u32 %v406, %v413
    %v416 = vshrl.u32 %v398, %v414
    %v417 = vor.u32 %v415, %v416
    %v418 = vsub.s32 4294967266, %v413
    %v419 = vadd.s32 %v418, 127
    %v420 = vshll.u32 %v419, 23
    %v421 = vor.u32 4788187, %v420
    %v422 = vand.u32 2147483647, %v421
    %v424 = vcvt.s32.f32 %v417
    %v425 = vmul.f32 %v424, %v422
    %v426 = vxor.u32 %v425, 2147483648
    %v427 = vsel %vm344, %v426, %v425
    %v428 = vsub.s32 4, %v404
    %v429 = vsel %vm344, %v428, %v404
    %v430 = vsel %vm343, %v237, %v427
    %v431 = vsel %vm343, 0, %v429
    %v432 = vcosq.f32.pop %v430
    %v433 = vsinq.f32.pop %v430
    %vm434 = vweird.f32 %v237
    %v435 = vadd.s32 %v431, 3
    %v436 = vand.u32 %v435, 3
    %vm437 = vcmp.lt.s32.totalorder %v436, 2
    %vm438 = vcmp.eq.s32.totalorder %v436, 0
    %v439 = vxor.u32 %v433, 2147483648
    %v440 = vsel %vm438, %v432, %v439
    %vm441 = vcmp.eq.s32.totalorder %v436, 2
    %v442 = vxor.u32 %v432, 2147483648
    %v443 = vsel %vm441, %v442, %v433
    %v444 = vsel %vm437, %v440, %v443
    %v445 = vsel %vm434, nan, %v444
    %446 = vst [vmem:[#allocation2 + $0x18] sm:$0x3f] %v445
    %v447 = vlaneseq
    %v448 = vshrl.u32 %v447, 7
    %v449 = vsub.s32 2, %v448
    %v450 = vrot.slane %v12, %v449
    %v451 = vmul.f32 %v450, %v21
    %v452 = vand.u32 2147483647, %v451
    %vm453 = vcmp.le.f32.partialorder %v452, 0.7853982
    %vm454 = vcmp.lt.s32.totalorder %v451, 0
    %v455 = vand.u32 %v451, 2139095040
    %v456 = vshrl.u32 %v455, 23
    %v457 = vsub.s32 %v456, 127
    %v458 = vand.u32 2147483647, %v451
    %v459 = vand.u32 %v458, 8388607
    %v460 = vor.u32 %v459, 8388608
    %v461 = vsub.s32 0, %v460
    %v462 = vadd.s32 %v457, 1
    %vm463 = vcmp.gt.s32.totalorder %v462, 0
    %v464 = vsel %vm463, %v462, 0
    %v465 = vshrl.u32 %v464, 5
    %v466 = vand.u32 %v464, 31
    %v467 = vsub.s32 32, %v466
    %v468 = vshrl.u32 683565275, %v467
    %v469 = vshll.u32 683565275, %v466
    %v470 = vshrl.u32 2475754826, %v467
    %v471 = vor.u32 %v469, %v470
    %v472 = vshll.u32 2475754826, %v466
    %v473 = vshrl.u32 2131351028, %v467
    %v474 = vor.u32 %v472, %v473
    %v475 = vshll.u32 2131351028, %v466
    %v476 = vshrl.u32 2102212464, %v467
    %v477 = vor.u32 %v475, %v476
    %v478 = vshll.u32 2102212464, %v466
    %v479 = vshrl.u32 920167782, %v467
    %v480 = vor.u32 %v478, %v479
    %v481 = vshll.u32 920167782, %v466
    %v482 = vshrl.u32 1326507024, %v467
    %v483 = vor.u32 %v481, %v482
    %vm484 = vcmp.lt.s32.totalorder %v465, 1
    %vm485 = vcmp.lt.s32.totalorder %v465, 2
    %vm486 = vcmp.lt.s32.totalorder %v465, 3
    %vm487 = vcmp.lt.s32.totalorder %v465, 4
    %v488 = vsel %vm484, %v468, %v471
    %v489 = vsel %vm487, %v477, 2102212464
    %v490 = vsel %vm486, %v474, %v489
    %v491 = vsel %vm485, %v488, %v490
    %v492 = vsel %vm484, %v471, %v474
    %v493 = vsel %vm487, %v480, 920167782
    %v494 = vsel %vm486, %v477, %v493
    %v495 = vsel %vm485, %v492, %v494
    %v496 = vsel %vm484, %v474, %v477
    %v497 = vsel %vm487, %v483, 1326507024
    %v498 = vsel %vm486, %v480, %v497
    %v499 = vsel %vm485, %v496, %v498
    %v500 = vshll.u32 %v460, 8
    %v501 = vmul.u32.u64.compose %v500, %v499
    %v502 = vextract.low.u32 %v501
    %v503 = vextract.high.u32 %v501
    %v504 = vmul.u32.u64.compose %v500, %v495
    %v505 = vextract.low.u32 %v504
    %v506 = vextract.high.u32 %v504
    %v507 = vmul.u32 %v500, %v491
    %v508 = vadd.s32 %v503, %v505
    %vm509 = vc.u32 %v503, %v505
    %v510 = vadd.s32 %v506, 1
    %v511 = vsel %vm509, %v510, %v506
    %v512 = vadd.s32 %v507, %v511
    %v513 = vadd.s32 %v512, 536870912
    %v514 = vshrl.u32 %v513, 30
    %v515 = vshll.u32 %v514, 30
    %v516 = vsub.s32 %v512, %v515
    %vm517 = vcmp.lt.s32.totalorder %v516, 0
    %v518 = vsub.s32 0, %v516
    %v519 = vsel %vm517, %v518, %v516
    %v520 = vclz %v519
    %v521 = vsub.s32 %v520, 2
    %vm522 = vcmp.gt.s32.totalorder 0, %v521
    %v523 = vsel %vm522, 0, %v521
    %v524 = vsub.s32 32, %v523
    %v525 = vshll.u32 %v516, %v523
    %v526 = vshrl.u32 %v508, %v524
    %v527 = vor.u32 %v525, %v526
    %v528 = vsub.s32 4294967266, %v523
    %v529 = vadd.s32 %v528, 127
    %v530 = vshll.u32 %v529, 23
    %v531 = vor.u32 4788187, %v530
    %v532 = vand.u32 2147483647, %v531
    %v534 = vcvt.s32.f32 %v527
    %v535 = vmul.f32 %v534, %v532
    %v536 = vxor.u32 %v535, 2147483648
    %v537 = vsel %vm454, %v536, %v535
    %v538 = vsub.s32 4, %v514
    %v539 = vsel %vm454, %v538, %v514
    %v540 = vsel %vm453, %v451, %v537
    %v541 = vsel %vm453, 0, %v539
    %v542 = vcosq.f32.pop %v540
    %v543 = vsinq.f32.pop %v540
    %vm544 = vweird.f32 %v451
    %v545 = vand.u32 %v541, 3
    %vm546 = vcmp.lt.s32.totalorder %v545, 2
    %vm547 = vcmp.eq.s32.totalorder %v545, 0
    %v548 = vxor.u32 %v543, 2147483648
    %v549 = vsel %vm547, %v542, %v548
    %vm550 = vcmp.eq.s32.totalorder %v545, 2
    %v551 = vxor.u32 %v542, 2147483648
    %v552 = vsel %vm550, %v551, %v543
    %v553 = vsel %vm546, %v549, %v552
    %v554 = vsel %vm544, nan, %v553
    %555 = vst [vmem:[#allocation2 + $0xc] sm:$0x3f] %v554
    %v556 = vand.u32 2147483647, %v451
    %vm557 = vcmp.le.f32.partialorder %v556, 0.7853982
    %vm558 = vcmp.lt.s32.totalorder %v451, 0
    %v559 = vand.u32 %v451, 2139095040
    %v560 = vshrl.u32 %v559, 23
    %v561 = vsub.s32 %v560, 127
    %v562 = vand.u32 2147483647, %v451
    %v563 = vand.u32 %v562, 8388607
    %v564 = vor.u32 %v563, 8388608
    %v565 = vsub.s32 0, %v564
    %v566 = vadd.s32 %v561, 1
    %vm567 = vcmp.gt.s32.totalorder %v566, 0
    %v568 = vsel %vm567, %v566, 0
    %v569 = vshrl.u32 %v568, 5
    %v570 = vand.u32 %v568, 31
    %v571 = vsub.s32 32, %v570
    %v572 = vshrl.u32 683565275, %v571
    %v573 = vshll.u32 683565275, %v570
    %v574 = vshrl.u32 2475754826, %v571
    %v575 = vor.u32 %v573, %v574
    %v576 = vshll.u32 2475754826, %v570
    %v577 = vshrl.u32 2131351028, %v571
    %v578 = vor.u32 %v576, %v577
    %v579 = vshll.u32 2131351028, %v570
    %v580 = vshrl.u32 2102212464, %v571
    %v581 = vor.u32 %v579, %v580
    %v582 = vshll.u32 2102212464, %v570
    %v583 = vshrl.u32 920167782, %v571
    %v584 = vor.u32 %v582, %v583
    %v585 = vshll.u32 920167782, %v570
    %v586 = vshrl.u32 1326507024, %v571
    %v587 = vor.u32 %v585, %v586
    %vm588 = vcmp.lt.s32.totalorder %v569, 1
    %vm589 = vcmp.lt.s32.totalorder %v569, 2
    %vm590 = vcmp.lt.s32.totalorder %v569, 3
    %vm591 = vcmp.lt.s32.totalorder %v569, 4
    %v592 = vsel %vm588, %v572, %v575
    %v593 = vsel %vm591, %v581, 2102212464
    %v594 = vsel %vm590, %v578, %v593
    %v595 = vsel %vm589, %v592, %v594
    %v596 = vsel %vm588, %v575, %v578
    %v597 = vsel %vm591, %v584, 920167782
    %v598 = vsel %vm590, %v581, %v597
    %v599 = vsel %vm589, %v596, %v598
    %v600 = vsel %vm588, %v578, %v581
    %v601 = vsel %vm591, %v587, 1326507024
    %v602 = vsel %vm590, %v584, %v601
    %v603 = vsel %vm589, %v600, %v602
    %v604 = vshll.u32 %v564, 8
    %v605 = vmul.u32.u64.compose %v604, %v603
    %v606 = vextract.low.u32 %v605
    %v607 = vextract.high.u32 %v605
    %v608 = vmul.u32.u64.compose %v604, %v599
    %v609 = vextract.low.u32 %v608
    %v610 = vextract.high.u32 %v608
    %v611 = vmul.u32 %v604, %v595
    %v612 = vadd.s32 %v607, %v609
    %vm613 = vc.u32 %v607, %v609
    %v614 = vadd.s32 %v610, 1
    %v615 = vsel %vm613, %v614, %v610
    %v616 = vadd.s32 %v611, %v615
    %v617 = vadd.s32 %v616, 536870912
    %v618 = vshrl.u32 %v617, 30
    %v619 = vshll.u32 %v618, 30
    %v620 = vsub.s32 %v616, %v619
    %vm621 = vcmp.lt.s32.totalorder %v620, 0
    %v622 = vsub.s32 0, %v620
    %v623 = vsel %vm621, %v622, %v620
    %v624 = vclz %v623
    %v625 = vsub.s32 %v624, 2
    %vm626 = vcmp.gt.s32.totalorder 0, %v625
    %v627 = vsel %vm626, 0, %v625
    %v628 = vsub.s32 32, %v627
    %v629 = vshll.u32 %v620, %v627
    %v630 = vshrl.u32 %v612, %v628
    %v631 = vor.u32 %v629, %v630
    %v632 = vsub.s32 4294967266, %v627
    %v633 = vadd.s32 %v632, 127
    %v634 = vshll.u32 %v633, 23
    %v635 = vor.u32 4788187, %v634
    %v636 = vand.u32 2147483647, %v635
    %v638 = vcvt.s32.f32 %v631
    %v639 = vmul.f32 %v638, %v636
    %v640 = vxor.u32 %v639, 2147483648
    %v641 = vsel %vm558, %v640, %v639
    %v642 = vsub.s32 4, %v618
    %v643 = vsel %vm558, %v642, %v618
    %v644 = vsel %vm557, %v451, %v641
    %v645 = vsel %vm557, 0, %v643
    %v646 = vcosq.f32.pop %v644
    %v647 = vsinq.f32.pop %v644
    %vm648 = vweird.f32 %v451
    %v649 = vadd.s32 %v645, 3
    %v650 = vand.u32 %v649, 3
    %vm651 = vcmp.lt.s32.totalorder %v650, 2
    %vm652 = vcmp.eq.s32.totalorder %v650, 0
    %v653 = vxor.u32 %v647, 2147483648
    %v654 = vsel %vm652, %v646, %v653
    %vm655 = vcmp.eq.s32.totalorder %v650, 2
    %v656 = vxor.u32 %v646, 2147483648
    %v657 = vsel %vm655, %v656, %v647
    %v658 = vsel %vm651, %v654, %v657
    %v659 = vsel %vm648, nan, %v658
    %660 = vst [vmem:[#allocation2 + $0x1e] sm:$0x3f] %v659
    %661 = vst [vmem:[#allocation2 + $0x24] sm:$0x7] %v12
    // Predicated region
    $region10: #{tpu_custom_call.1} parent=1 // pred_check
      _
    $region11: #{tpu_custom_call.1} parent=1 // pred_check_branch
      %663 = sbr.rel (0) target = $region13
    $region12: #{tpu_custom_call.1} parent=1 // pred_region
      %s665 = ssub.s32 640, 640
      %666 = vsyncadd [#allocation3], %s665
      %s667 = sshll.u32 [#allocation2], 4
      %s668 = int_to_ptr.vmem [resolvable:$true] %s667
      %673 = dma.vmem_to_hbm [thread:$0]  %s668, 640, %s2, [#allocation3], 128, 128, 8
    $region13: #{tpu_custom_call.1} parent=1 // pred_fallthru
      _
    // Predicated region
    $region14: #{tpu_custom_call.1} parent=1 // pred_check
      _
    $region15: #{tpu_custom_call.1} parent=1 // pred_check_branch
      %675 = sbr.rel (0) target = $region17
    $region16: #{tpu_custom_call.1} parent=1 // pred_region
      %676 = dma.done [#allocation3], 640
    $region17: #{tpu_custom_call.1} parent=1 // pred_fallthru
      _
    %677 = vsyncpa [#allocation3], 1

</llo_original>
